<compile_context>
chip_gen: v5e
topology: v5e:2x2
jax: 0.10.0
libtpu: 0.0.40
codegen_flags: <defaults>
</compile_context>

<pallas_src>
import functools

import jax
import jax.numpy as jnp
from jax.experimental import pallas as pl
from jax.experimental.pallas import tpu as pltpu

_LANE = 128          # vreg lane width
_SUBLANE = 8         # vreg sublane height for f32 (would be 16 for bf16)
_SLAB_LANES = 512    # slab / tile width  (multiple of 128 -> unmasked vst)
_TILE_ROWS = 512     # target tile rows   (512x512 f32 tile = 1 MiB)


def _round_up(x: int, m: int) -> int:
    return (x + m - 1) // m * m


def _slab_rows(n_elems: int) -> int:
    """Rows of the packed slab for n_elems real f32 values."""
    rows = _round_up(max(1, pl.cdiv(n_elems, _SLAB_LANES)), _SUBLANE)
    tile_rows = min(_TILE_ROWS, rows)
    return _round_up(rows, tile_rows)


def _tile_rows(rows: int) -> int:
    return min(_TILE_ROWS, rows)


# ----------------------------- kernels --------------------------------------

def _clamp_sigmoid_kernel(p_ref, out_ref, clamped_ref):
    """clamp to [-2, 2]; write clamped params (aliased to input); sigmoid(4x)."""
    x = jnp.clip(p_ref[...], -2.0, 2.0)
    clamped_ref[...] = x
    # sigmoid(4x) == 0.5 * (tanh(2x) + 1): single EUP transcendental + VPU FMA.
    out_ref[...] = 0.5 * (jnp.tanh(2.0 * x) + 1.0)


def _sigmoid_kernel(p_ref, out_ref):
    """Params already clamped: only the activation is recomputed."""
    x = jnp.clip(p_ref[...], -2.0, 2.0)   # cheap VPU safeguard, values unchanged
    out_ref[...] = 0.5 * (jnp.tanh(2.0 * x) + 1.0)


def _run_slab_kernel(packed, write_clamped: bool):
    rows, cols = packed.shape
    tr = _tile_rows(rows)
    grid = (rows // tr,)
    spec = pl.BlockSpec((tr, cols), lambda i: (i, 0))
    cparams = pltpu.CompilerParams(dimension_semantics=("parallel",))

    if write_clamped:
        out_slab, clamped_slab = pl.pallas_call(
            _clamp_sigmoid_kernel,
            out_shape=(
                jax.ShapeDtypeStruct((rows, cols), packed.dtype),
                jax.ShapeDtypeStruct((rows, cols), packed.dtype),
            ),
            grid=grid,
            in_specs=[spec],
            out_specs=(spec, spec),
            input_output_aliases={0: 1},   # clamped params reuse the input buffer
            compiler_params=cparams,
        )(packed)
        return out_slab, clamped_slab

    out_slab = pl.pallas_call(
        _sigmoid_kernel,
        out_shape=jax.ShapeDtypeStruct((rows, cols), packed.dtype),
        grid=grid,
        in_specs=[spec],
        out_specs=spec,
        compiler_params=cparams,
    )(packed)
    return out_slab, None


# --------------------------- jitted forwards ---------------------------------

def _unpack(out_slab, batch, sizes, offsets):
    flat = out_slab.reshape(-1)
    return tuple(
        flat[o:o + batch * s].reshape(batch, s)
        for s, o in zip(sizes, offsets)
    )


@functools.partial(jax.jit, donate_argnums=(0,),
                   static_argnames=("batch", "sizes", "offsets"))
def _forward_and_clamp(packed, *, batch, sizes, offsets):
    out_slab, clamped_slab = _run_slab_kernel(packed, write_clamped=True)
    return _unpack(out_slab, batch, sizes, offsets), clamped_slab


@functools.partial(jax.jit, static_argnames=("batch", "sizes", "offsets"))
def _forward_only(packed, *, batch, sizes, offsets):
    out_slab, _ = _run_slab_kernel(packed, write_clamped=False)
    return _unpack(out_slab, batch, sizes, offsets)


# ------------------------------- module --------------------------------------

class PIEmbeddingPallas:
    """JAX/Pallas port of the PyTorch PIEmbedding module.

    Parameters live packed & tail-padded in a single lane-dense slab; the
    clamped slab returned by the kernel replaces that storage (emulating the
    in-place ``param.data.clamp_``).
    """

    def __init__(self, input_names, input_shape, batch_size=1, key=None):
        assert len(input_names) == len(input_shape)
        self.input_names = list(input_names)
        self.sizes = tuple(int(s) for s in input_shape)
        self.batch = int(batch_size)

        offsets, off = [], 0
        for s in self.sizes:
            offsets.append(off)
            off += self.batch * s
        self.offsets = tuple(offsets)
        self._n_real = off

        if key is None:
            key = jax.random.PRNGKey(0)
        keys = jax.random.split(key, len(self.sizes))
        # torch.randn(batch_size, size) equivalent init, flattened and packed once.
        flat = jnp.concatenate([
            jax.random.normal(k, (self.batch * s,), dtype=jnp.float32)
            for k, s in zip(keys, self.sizes)
        ])
        rows = _slab_rows(self._n_real)
        self.packed = jnp.pad(
            flat, (0, rows * _SLAB_LANES - self._n_real)
        ).reshape(rows, _SLAB_LANES)
        self._needs_clamp = True   # params may lie outside [-2, 2]

    def get_parameters(self):
        flat = self.packed.reshape(-1)
        return [flat[o:o + self.batch * s].reshape(self.batch, s)
                for s, o in zip(self.sizes, self.offsets)]

    def set_parameters(self, params):
        assert len(params) == len(self.sizes)
        flat = jnp.concatenate(
            [jnp.asarray(p, jnp.float32).reshape(-1) for p in params])
        assert flat.size == self._n_real
        self.packed = jnp.pad(
            flat, (0, self.packed.size - self._n_real)
        ).reshape(self.packed.shape)
        self._needs_clamp = True

    def forward(self):
        kw = dict(batch=self.batch, sizes=self.sizes, offsets=self.offsets)
        if self._needs_clamp:
            outputs, self.packed = _forward_and_clamp(self.packed, **kw)
            self._needs_clamp = False
        else:
            # clamp is idempotent and nothing touched the params: skip the
            # second (clamped-param) store entirely.
            outputs = _forward_only(self.packed, **kw)
        return list(outputs)


# ------------------------------- self-test ------------------------------------

def _reference_forward(params):
    return [jax.nn.sigmoid(4.0 * jnp.clip(p, -2.0, 2.0)) for p in params]


if __name__ == "__main__":
    key = jax.random.PRNGKey(0)

    # Small shapes consistent with the module: 3 primary inputs, batch=2.
    model = PIEmbeddingPallas(["pi_a", "pi_b", "pi_c"], [16, 32, 8],
                              batch_size=2, key=key)
    ref_params = [jnp.asarray(p) for p in model.get_parameters()]

    outs = [jax.block_until_ready(o) for o in model.forward()]
    refs = _reference_forward(ref_params)
    for o, r in zip(outs, refs):
        assert o.shape == r.shape and o.dtype == r.dtype
        assert float(jnp.max(jnp.abs(o - r))) < 1e-5

    # Emulated in-place clamp of the parameter storage.
    for p_new, p_old in zip(model.get_parameters(), ref_params):
        assert float(jnp.max(jnp.abs(p_new - jnp.clip(p_old, -2.0, 2.0)))) < 1e-6

    # Second forward takes the single-output (already-clamped) path.
    outs2 = [jax.block_until_ready(o) for o in model.forward()]
    for a, b in zip(outs, outs2):
        assert float(jnp.max(jnp.abs(a - b))) < 1e-5

    # Larger config to exercise a multi-tile grid (several 512x512 tiles).
    big = PIEmbeddingPallas(["a", "b"], [200000, 150000], batch_size=2,
                            key=jax.random.PRNGKey(1))
    big_ref = [jnp.asarray(p) for p in big.get_parameters()]
    big_out = [jax.block_until_ready(o) for o in big.forward()]
    for o, r in zip(big_out, _reference_forward(big_ref)):
        assert o.shape == r.shape
        assert float(jnp.max(jnp.abs(o - r))) < 1e-5

    print("KERNEL_OK")
</pallas_src>

<mosaic_0001>
module attributes {stable_mosaic.version = 11 : i64} {
  func.func @_clamp_sigmoid_kernel(%arg0: i32, %arg1: memref<8x512xf32, #tpu.memory_space<vmem>>, %arg2: memref<8x512xf32, #tpu.memory_space<vmem>>, %arg3: memref<8x512xf32, #tpu.memory_space<vmem>>) attributes {dimension_semantics = [#tpu.dimension_semantics<parallel>], iteration_bounds = array<i64: 1>, scalar_prefetch = 0 : i64, scratch_operands = 0 : i64, tpu.core_type = #tpu.core_type<tc>, window_params = [{transform_indices = @transform_0, window_bounds = array<i64: 8, 512>}, {transform_indices = @transform_1, window_bounds = array<i64: 8, 512>}, {transform_indices = @transform_2, window_bounds = array<i64: 8, 512>}]} {
    %c0 = arith.constant 0 : index
    %c0_0 = arith.constant 0 : index
    %0 = vector.load %arg1[%c0, %c0_0] : memref<8x512xf32, #tpu.memory_space<vmem>>, vector<8x512xf32>
    %cst = arith.constant -2.000000e+00 : f32
    %cst_1 = arith.constant 2.000000e+00 : f32
    %1 = vector.broadcast %cst : f32 to vector<8x512xf32>
    %2 = arith.maximumf %1, %0 : vector<8x512xf32>
    %3 = vector.broadcast %cst_1 : f32 to vector<8x512xf32>
    %4 = arith.minimumf %3, %2 : vector<8x512xf32>
    %c0_2 = arith.constant 0 : index
    %c0_3 = arith.constant 0 : index
    %5 = vector.load %arg3[%c0_2, %c0_3] : memref<8x512xf32, #tpu.memory_space<vmem>>, vector<8x512xf32>
    tpu.vector_store %arg3[%c0_2, %c0_3], %4 {strides = array<i32>} : memref<8x512xf32, #tpu.memory_space<vmem>>, vector<8x512xf32>,
    %cst_4 = arith.constant 2.000000e+00 : f32
    %6 = vector.broadcast %cst_4 : f32 to vector<8x512xf32>
    %7 = arith.mulf %6, %4 : vector<8x512xf32>
    %8 = math.tanh %7 : vector<8x512xf32>
    %cst_5 = arith.constant 1.000000e+00 : f32
    %9 = vector.broadcast %cst_5 : f32 to vector<8x512xf32>
    %10 = arith.addf %8, %9 : vector<8x512xf32>
    %cst_6 = arith.constant 5.000000e-01 : f32
    %11 = vector.broadcast %cst_6 : f32 to vector<8x512xf32>
    %12 = arith.mulf %11, %10 : vector<8x512xf32>
    %c0_7 = arith.constant 0 : index
    %c0_8 = arith.constant 0 : index
    %13 = vector.load %arg2[%c0_7, %c0_8] : memref<8x512xf32, #tpu.memory_space<vmem>>, vector<8x512xf32>
    tpu.vector_store %arg2[%c0_7, %c0_8], %12 {strides = array<i32>} : memref<8x512xf32, #tpu.memory_space<vmem>>, vector<8x512xf32>,
    return
  }
  func.func @transform_0(%arg0: i32) -> (i32, i32) {
    %c0_i32 = arith.constant 0 : i32
    %c0_i32_0 = arith.constant 0 : i32
    return %arg0, %c0_i32 : i32, i32
  }
  func.func @transform_1(%arg0: i32) -> (i32, i32) {
    %c0_i32 = arith.constant 0 : i32
    %c0_i32_0 = arith.constant 0 : i32
    return %arg0, %c0_i32 : i32, i32
  }
  func.func @transform_2(%arg0: i32) -> (i32, i32) {
    %c0_i32 = arith.constant 0 : i32
    %c0_i32_0 = arith.constant 0 : i32
    return %arg0, %c0_i32 : i32, i32
  }
}

</mosaic_0001>

<llo_original>
// kernel: _forward_and_clamp.1
$region0: #{_forward_and_clamp.1}
  #allocation0 [shape = 'u32[]', space=smem, size = 0x4, offset = 0x4, fixed_abs, tag = 'smem constant byte address 0x4 - core index']
  #allocation1 [shape = 'u32[72,128]{1,0:T(1,128)}', space=vmem, size = 0x9000, scoped, tag = 'internal scratch']
  %s0 = inlined_call_operand.hbm [shape: f32[8,512], index: 0, kind: input, shape index: {}, may-alias: {0,2}]
  %s1 = inlined_call_operand.vmem [shape: f32[8,512], index: 1, kind: output, shape index: {0}]
  %s2 = inlined_call_operand.hbm [shape: f32[8,512], index: 2, kind: output, shape index: {1}, may-alias: {0,2}]
  %3 = xla_tuple %s1, %s2
  %s4 = sld [smem:[#allocation0]]
  $region26: #{_forward_and_clamp.1} parent=0
    _
  %s6 = ssub.s32 1, %s4
  %s7 = scalar_select 0, %s6, %s4
  $region1: #{_forward_and_clamp.1} parent=0
    #allocation2 [shape = 'u8[16384]{0}', space=vmem, size = 0x4000, scoped, tag = 'input window, operand 0, single buffered']
    #allocation3 [shape = 's32[1]{0}', space=sflag, size = 0x4, scoped, tag = 'scoped memory for _forward_and_clamp.1']
    #allocation4 [shape = 's32[1]{0}', space=sflag, size = 0x4, scoped, tag = 'scoped memory for _forward_and_clamp.1']
    #allocation5 [shape = 'u8[16384]{0}', space=vmem, size = 0x4000, scoped, tag = 'output window, operand 1, single buffered']
    %8 = vsyncpa [#allocation3], 0
    %9 = vsyncpa [#allocation4], 0
    // Predicated region
    $region2: #{_forward_and_clamp.1} parent=1 // pred_check
      _
    $region3: #{_forward_and_clamp.1} parent=1 // pred_check_branch
      %11 = sbr.rel (0) target = $region5
    $region4: #{_forward_and_clamp.1} parent=1 // pred_region
      %13 = vsyncadd [#allocation3], 0
      %s15 = sshll.u32 %s0, 4
      %s16 = int_to_ptr.hbm [resolvable:$true] %s15
      %s17 = sshll.u32 [#allocation2], 4
      %s18 = int_to_ptr.vmem [resolvable:$true] %s17
      %20 = dma.hbm_to_vmem [thread:$0]  %s16, 512, %s18, [#allocation3]
    $region5: #{_forward_and_clamp.1} parent=1 // pred_fallthru
      _
    // Predicated region
    $region6: #{_forward_and_clamp.1} parent=1 // pred_check
      _
    $region7: #{_forward_and_clamp.1} parent=1 // pred_check_branch
      %22 = sbr.rel (0) target = $region9
    $region8: #{_forward_and_clamp.1} parent=1 // pred_region
      %24 = dma.done [#allocation3], 512
    $region9: #{_forward_and_clamp.1} parent=1 // pred_fallthru
      _
    %v25 = vld [vmem:[#allocation2] sm:$0xff]
    %v26 = vld [vmem:[#allocation2 + $0x8] sm:$0xff]
    %v27 = vld [vmem:[#allocation2 + $0x10] sm:$0xff]
    %v28 = vld [vmem:[#allocation2 + $0x18] sm:$0xff]
    %v29 = vmax.f32 %v25, -2.0
    %v30 = vmax.f32 %v26, -2.0
    %v31 = vmax.f32 %v27, -2.0
    %v32 = vmax.f32 %v28, -2.0
    %v33 = vmin.f32 %v29, 2.0
    %v34 = vmin.f32 %v30, 2.0
    %v35 = vmin.f32 %v31, 2.0
    %v36 = vmin.f32 %v32, 2.0
    %37 = vst [vmem:[#allocation5] sm:$0xff] %v33
    %38 = vst [vmem:[#allocation5 + $0x8] sm:$0xff] %v34
    %39 = vst [vmem:[#allocation5 + $0x10] sm:$0xff] %v35
    %40 = vst [vmem:[#allocation5 + $0x18] sm:$0xff] %v36
    %v41 = vmul.f32 %v33, 2.0
    %v42 = vmul.f32 %v34, 2.0
    %v43 = vmul.f32 %v35, 2.0
    %v44 = vmul.f32 %v36, 2.0
    %v45 = vtanh.pop %v41
    %v46 = vtanh.pop %v42
    %v47 = vtanh.pop %v43
    %v48 = vtanh.pop %v44
    %v49 = vadd.f32 %v45, 1.0
    %v50 = vadd.f32 %v46, 1.0
    %v51 = vadd.f32 %v47, 1.0
    %v52 = vadd.f32 %v48, 1.0
    %v53 = vmul.f32 %v49, 0.5
    %v54 = vmul.f32 %v50, 0.5
    %v55 = vmul.f32 %v51, 0.5
    %v56 = vmul.f32 %v52, 0.5
    %57 = vst [vmem:[%s1] sm:$0xff] %v53
    %58 = vst [vmem:[%s1 + $0x8] sm:$0xff] %v54
    %59 = vst [vmem:[%s1 + $0x10] sm:$0xff] %v55
    %60 = vst [vmem:[%s1 + $0x18] sm:$0xff] %v56
    // Predicated region
    $region10: #{_forward_and_clamp.1} parent=1 // pred_check
      _
    $region11: #{_forward_and_clamp.1} parent=1 // pred_check_branch
      %62 = sbr.rel (0) target = $region13
    $region12: #{_forward_and_clamp.1} parent=1 // pred_region
      _
    $region13: #{_forward_and_clamp.1} parent=1 // pred_fallthru
      _
    // Predicated region
    $region14: #{_forward_and_clamp.1} parent=1 // pred_check
      _
    $region15: #{_forward_and_clamp.1} parent=1 // pred_check_branch
      %64 = sbr.rel (0) target = $region17
    $region16: #{_forward_and_clamp.1} parent=1 // pred_region
      %66 = vsyncadd [#allocation4], 0
      %s68 = sshll.u32 [#allocation5], 4
      %s69 = int_to_ptr.vmem [resolvable:$true] %s68
      %s70 = sshll.u32 %s2, 4
      %s71 = int_to_ptr.hbm [resolvable:$true] %s70
      %73 = dma.vmem_to_hbm [thread:$0]  %s69, 512, %s71, [#allocation4]
    $region17: #{_forward_and_clamp.1} parent=1 // pred_fallthru
      _
    // Predicated region
    $region18: #{_forward_and_clamp.1} parent=1 // pred_check
      _
    $region19: #{_forward_and_clamp.1} parent=1 // pred_check_branch
      %75 = sbr.rel (0) target = $region21
    $region20: #{_forward_and_clamp.1} parent=1 // pred_region
      _
    $region21: #{_forward_and_clamp.1} parent=1 // pred_fallthru
      _
    // Predicated region
    $region22: #{_forward_and_clamp.1} parent=1 // pred_check
      _
    $region23: #{_forward_and_clamp.1} parent=1 // pred_check_branch
      %77 = sbr.rel (0) target = $region25
    $region24: #{_forward_and_clamp.1} parent=1 // pred_region
      %79 = dma.done [#allocation4], 512
    $region25: #{_forward_and_clamp.1} parent=1 // pred_fallthru
      _
    %80 = vsyncpa [#allocation3], 1
    %81 = vsyncpa [#allocation4], 1

</llo_original>
